<compile_context>
chip_gen: v7x
topology: tpu7x:2x2x1
jax: 0.10.0
libtpu: 0.0.40
codegen_flags: <defaults>
</compile_context>

<pallas_src>
import math
import jax
import jax.numpy as jnp
from jax.experimental import pallas as pl
from jax.experimental.pallas import tpu as pltpu


def output_model_kernel(x_ref, w1_ref, b1_ref, w2_ref, b2_ref, w3_ref, b3_ref,
                        out_ref):
    # x, W1, W2, W3 are bf16 (MXU-native); biases / accumulation / epilogue f32.
    x = x_ref[...]                                                   # (tile_n, d_k) bf16
    h1 = jnp.dot(x, w1_ref[...], preferred_element_type=jnp.float32) + b1_ref[...]
    h1 = jnp.maximum(h1, 0.0).astype(jnp.bfloat16)
    h2 = jnp.dot(h1, w2_ref[...], preferred_element_type=jnp.float32) + b2_ref[...]
    h2 = jnp.maximum(h2, 0.0).astype(jnp.bfloat16)
    o = jnp.dot(h2, w3_ref[...], preferred_element_type=jnp.float32) + b3_ref[...]
    # per-column post-processing (whole-tile select; EUP work on dead columns is free):
    #   cols 0,1 -> identity (means)
    #   cols 2,3 -> softplus + 0.01 (sigmas)
    #   col  4   -> tanh * 0.9 (rho)          (cols >=5 are zero-padded, sliced off)
    col = jax.lax.broadcasted_iota(jnp.int32, o.shape, 1)
    sp = jax.nn.softplus(o) + 0.01
    th = jnp.tanh(o) * 0.9
    out = jnp.where(col < 2, o, jnp.where(col < 4, sp, th))
    out_ref[...] = out.astype(out_ref.dtype)


def _round_up(n, m):
    return ((n + m - 1) // m) * m


def output_model_forward(agent_decoder_state, params, *, tile_n=512):
    T, BK, d_k = agent_decoder_state.shape
    N = T * BK

    w1, b1, w2, b2, w3, b3 = params
    n_out = w3.shape[1]          # 5
    n_out_pad = 128              # lane-dense output width

    # Zero-pad last layer to 128 output lanes (padded cols produce 0, sliced off).
    w3p = jnp.zeros((d_k, n_out_pad), w3.dtype).at[:, :n_out].set(w3)
    b3p = jnp.zeros((1, n_out_pad), b3.dtype).at[:, :n_out].set(b3)

    # Pick effective tile & padded row count (ragged N handled by zero-padding).
    if N <= tile_n:
        tile_eff = max(16, _round_up(N, 16))   # single grid step, bf16-sublane aligned
        n_pad = tile_eff
    else:
        tile_eff = tile_n
        n_pad = _round_up(N, tile_eff)

    x = agent_decoder_state.reshape(N, d_k)
    if n_pad != N:
        x = jnp.pad(x, ((0, n_pad - N), (0, 0)))

    # bf16 operands for the MXU; biases stay f32.
    x_bf = x.astype(jnp.bfloat16)
    w1_bf = w1.astype(jnp.bfloat16)
    w2_bf = w2.astype(jnp.bfloat16)
    w3_bf = w3p.astype(jnp.bfloat16)

    grid = (n_pad // tile_eff,)
    full = lambda i: (0, 0)

    out = pl.pallas_call(
        output_model_kernel,
        out_shape=jax.ShapeDtypeStruct((n_pad, n_out_pad), jnp.float32),
        grid_spec=pl.GridSpec(
            grid=grid,
            in_specs=[
                pl.BlockSpec((tile_eff, d_k), lambda i: (i, 0)),   # x rows
                pl.BlockSpec((d_k, d_k), full),                    # w1 (bf16)
                pl.BlockSpec((1, d_k), full),                      # b1 (f32)
                pl.BlockSpec((d_k, d_k), full),                    # w2 (bf16)
                pl.BlockSpec((1, d_k), full),                      # b2 (f32)
                pl.BlockSpec((d_k, n_out_pad), full),              # w3 padded (bf16)
                pl.BlockSpec((1, n_out_pad), full),                # b3 padded (f32)
            ],
            out_specs=pl.BlockSpec((tile_eff, n_out_pad), lambda i: (i, 0)),
        ),
        compiler_params=pltpu.CompilerParams(
            dimension_semantics=("parallel",)),
    )(x_bf, w1_bf, b1, w2_bf, b2, w3_bf, b3p)

    return out[:N, :n_out].reshape(T, BK, n_out)


def init_params(key, d_k=64):
    """Xavier-normal (gain=sqrt(2)) weights, zero biases — matches module init."""
    def xavier(key, fan_in, fan_out):
        gain = math.sqrt(2.0)
        std = gain * math.sqrt(2.0 / (fan_in + fan_out))
        # stored as (in, out) so the kernel does x @ W
        return std * jax.random.normal(key, (fan_in, fan_out), dtype=jnp.float32)

    k1, k2, k3 = jax.random.split(key, 3)
    w1 = xavier(k1, d_k, d_k)
    b1 = jnp.zeros((1, d_k), jnp.float32)
    w2 = xavier(k2, d_k, d_k)
    b2 = jnp.zeros((1, d_k), jnp.float32)
    w3 = xavier(k3, d_k, 5)
    b3 = jnp.zeros((1, 5), jnp.float32)
    return (w1, b1, w2, b2, w3, b3)


def reference_forward(agent_decoder_state, params):
    """Pure-JAX f32 reference mirroring the PyTorch forward."""
    w1, b1, w2, b2, w3, b3 = params
    T, BK, d_k = agent_decoder_state.shape
    x = agent_decoder_state.reshape(-1, d_k)
    h1 = jax.nn.relu(x @ w1 + b1)
    h2 = jax.nn.relu(h1 @ w2 + b2)
    o = (h2 @ w3 + b3).reshape(T, BK, 5)
    x_mean = o[:, :, 0]
    y_mean = o[:, :, 1]
    x_sigma = jax.nn.softplus(o[:, :, 2]) + 0.01
    y_sigma = jax.nn.softplus(o[:, :, 3]) + 0.01
    rho = jnp.tanh(o[:, :, 4]) * 0.9
    return jnp.stack([x_mean, y_mean, x_sigma, y_sigma, rho], axis=2)


if __name__ == "__main__":
    d_k = 64
    key = jax.random.PRNGKey(0)
    k_in, k_params, k_in2 = jax.random.split(key, 3)
    params = init_params(k_params, d_k)

    # Case 1: small shape (single grid step), matches the module's (T, BK, d_k) layout.
    T, BK = 8, 16            # N = 128 rows
    agent_decoder_state = jax.random.normal(k_in, (T, BK, d_k), dtype=jnp.float32)
    out = jax.block_until_ready(output_model_forward(agent_decoder_state, params))
    ref = reference_forward(agent_decoder_state, params)
    assert out.shape == (T, BK, 5), out.shape
    # bf16 matmul operands (f32 accumulation) -> loosened tolerance vs f32 reference.
    assert jnp.allclose(out, ref, atol=1e-1, rtol=1e-1), "mismatch vs reference (case 1)"

    # Case 2: ragged N (not a tile multiple) exercising the padded multi-step grid.
    T2, BK2 = 12, 100        # N = 1200 rows -> padded to 1536 with tile_n=512, grid=3
    x2 = jax.random.normal(k_in2, (T2, BK2, d_k), dtype=jnp.float32)
    out2 = jax.block_until_ready(output_model_forward(x2, params, tile_n=512))
    ref2 = reference_forward(x2, params)
    assert out2.shape == (T2, BK2, 5), out2.shape
    assert jnp.allclose(out2, ref2, atol=1e-1, rtol=1e-1), "mismatch vs reference (case 2)"

    print("KERNEL_OK")
</pallas_src>

<mosaic_0001>
module attributes {stable_mosaic.version = 11 : i64} {
  func.func @output_model_kernel(%arg0: i32, %arg1: memref<128x64xbf16, #tpu.memory_space<vmem>>, %arg2: memref<64x64xbf16, #tpu.memory_space<vmem>>, %arg3: memref<1x64xf32, #tpu.memory_space<vmem>>, %arg4: memref<64x64xbf16, #tpu.memory_space<vmem>>, %arg5: memref<1x64xf32, #tpu.memory_space<vmem>>, %arg6: memref<64x128xbf16, #tpu.memory_space<vmem>>, %arg7: memref<1x128xf32, #tpu.memory_space<vmem>>, %arg8: memref<128x128xf32, #tpu.memory_space<vmem>>) attributes {dimension_semantics = [#tpu.dimension_semantics<parallel>], iteration_bounds = array<i64: 1>, scalar_prefetch = 0 : i64, scratch_operands = 0 : i64, tpu.core_type = #tpu.core_type<tc>, window_params = [{transform_indices = @transform_0, window_bounds = array<i64: 128, 64>}, {pipeline_mode = #tpu.pipeline_mode<synchronous>, transform_indices = @transform_1, window_bounds = array<i64: 64, 64>}, {pipeline_mode = #tpu.pipeline_mode<synchronous>, transform_indices = @transform_2, window_bounds = array<i64: 1, 64>}, {pipeline_mode = #tpu.pipeline_mode<synchronous>, transform_indices = @transform_3, window_bounds = array<i64: 64, 64>}, {pipeline_mode = #tpu.pipeline_mode<synchronous>, transform_indices = @transform_4, window_bounds = array<i64: 1, 64>}, {pipeline_mode = #tpu.pipeline_mode<synchronous>, transform_indices = @transform_5, window_bounds = array<i64: 64, 128>}, {pipeline_mode = #tpu.pipeline_mode<synchronous>, transform_indices = @transform_6, window_bounds = array<i64: 1, 128>}, {transform_indices = @transform_7, window_bounds = array<i64: 128, 128>}]} {
    %c0 = arith.constant 0 : index
    %c0_0 = arith.constant 0 : index
    %0 = vector.load %arg1[%c0, %c0_0] : memref<128x64xbf16, #tpu.memory_space<vmem>>, vector<128x64xbf16>
    %c0_1 = arith.constant 0 : index
    %c0_2 = arith.constant 0 : index
    %1 = vector.load %arg2[%c0_1, %c0_2] : memref<64x64xbf16, #tpu.memory_space<vmem>>, vector<64x64xbf16>
    %cst = arith.constant dense<0.000000e+00> : vector<128x64xf32>
    %2 = tpu.matmul %0, %1, %cst {dimension_numbers = #tpu.dot_dimension_numbers<[1], [0], [0], [1], [0, 0, 1, 1], [], []>} : vector<128x64xbf16>, vector<64x64xbf16>, vector<128x64xf32> -> vector<128x64xf32>
    %c0_3 = arith.constant 0 : index
    %c0_4 = arith.constant 0 : index
    %3 = vector.load %arg3[%c0_3, %c0_4] : memref<1x64xf32, #tpu.memory_space<vmem>>, vector<1x64xf32>
    %4 = vector.broadcast %3 : vector<1x64xf32> to vector<128x64xf32>
    %5 = arith.addf %2, %4 : vector<128x64xf32>
    %cst_5 = arith.constant 0.000000e+00 : f32
    %6 = vector.broadcast %cst_5 : f32 to vector<128x64xf32>
    %7 = arith.maximumf %5, %6 : vector<128x64xf32>
    %8 = arith.truncf %7 : vector<128x64xf32> to vector<128x64xbf16>
    %c0_6 = arith.constant 0 : index
    %c0_7 = arith.constant 0 : index
    %9 = vector.load %arg4[%c0_6, %c0_7] : memref<64x64xbf16, #tpu.memory_space<vmem>>, vector<64x64xbf16>
    %cst_8 = arith.constant dense<0.000000e+00> : vector<128x64xf32>
    %10 = tpu.matmul %8, %9, %cst_8 {dimension_numbers = #tpu.dot_dimension_numbers<[1], [0], [0], [1], [0, 0, 1, 1], [], []>} : vector<128x64xbf16>, vector<64x64xbf16>, vector<128x64xf32> -> vector<128x64xf32>
    %c0_9 = arith.constant 0 : index
    %c0_10 = arith.constant 0 : index
    %11 = vector.load %arg5[%c0_9, %c0_10] : memref<1x64xf32, #tpu.memory_space<vmem>>, vector<1x64xf32>
    %12 = vector.broadcast %11 : vector<1x64xf32> to vector<128x64xf32>
    %13 = arith.addf %10, %12 : vector<128x64xf32>
    %cst_11 = arith.constant 0.000000e+00 : f32
    %14 = vector.broadcast %cst_11 : f32 to vector<128x64xf32>
    %15 = arith.maximumf %13, %14 : vector<128x64xf32>
    %16 = arith.truncf %15 : vector<128x64xf32> to vector<128x64xbf16>
    %c0_12 = arith.constant 0 : index
    %c0_13 = arith.constant 0 : index
    %17 = vector.load %arg6[%c0_12, %c0_13] : memref<64x128xbf16, #tpu.memory_space<vmem>>, vector<64x128xbf16>
    %cst_14 = arith.constant dense<0.000000e+00> : vector<128x128xf32>
    %18 = tpu.matmul %16, %17, %cst_14 {dimension_numbers = #tpu.dot_dimension_numbers<[1], [0], [0], [1], [0, 0, 1, 1], [], []>} : vector<128x64xbf16>, vector<64x128xbf16>, vector<128x128xf32> -> vector<128x128xf32>
    %c0_15 = arith.constant 0 : index
    %c0_16 = arith.constant 0 : index
    %19 = vector.load %arg7[%c0_15, %c0_16] : memref<1x128xf32, #tpu.memory_space<vmem>>, vector<1x128xf32>
    %20 = vector.broadcast %19 : vector<1x128xf32> to vector<128x128xf32>
    %21 = arith.addf %18, %20 : vector<128x128xf32>
    %22 = tpu.iota {dimensions = array<i32: 1>} : vector<128x128xi32>
    %cst_17 = arith.constant 0.000000e+00 : f32
    %23 = vector.broadcast %cst_17 : f32 to vector<128x128xf32>
    %24 = arith.maximumf %21, %23 : vector<128x128xf32>
    %25 = vector.broadcast %cst_17 : f32 to vector<128x128xf32>
    %26 = arith.subf %21, %25 : vector<128x128xf32>
    %27 = arith.cmpf one, %26, %26 : vector<128x128xf32>
    %28 = vector.broadcast %cst_17 : f32 to vector<128x128xf32>
    %29 = arith.addf %21, %28 : vector<128x128xf32>
    %30 = math.absf %26 : vector<128x128xf32>
    %cst_18 = arith.constant 0.000000e+00 : f32
    %31 = vector.broadcast %cst_18 : f32 to vector<128x128xf32>
    %32 = arith.subf %31, %30 : vector<128x128xf32>
    %33 = math.exp %32 : vector<128x128xf32>
    %34 = math.log1p %33 : vector<128x128xf32>
    %35 = arith.addf %24, %34 : vector<128x128xf32>
    %36 = arith.select %27, %29, %35 : vector<128x128xi1>, vector<128x128xf32>
    %cst_19 = arith.constant 0.00999999977 : f32
    %37 = vector.broadcast %cst_19 : f32 to vector<128x128xf32>
    %38 = arith.addf %36, %37 : vector<128x128xf32>
    %39 = math.tanh %21 : vector<128x128xf32>
    %cst_20 = arith.constant 0.899999976 : f32
    %40 = vector.broadcast %cst_20 : f32 to vector<128x128xf32>
    %41 = arith.mulf %39, %40 : vector<128x128xf32>
    %c2_i32 = arith.constant 2 : i32
    %42 = vector.broadcast %c2_i32 : i32 to vector<128x128xi32>
    %43 = arith.cmpi slt, %22, %42 : vector<128x128xi32>
    %c4_i32 = arith.constant 4 : i32
    %44 = vector.broadcast %c4_i32 : i32 to vector<128x128xi32>
    %45 = arith.cmpi slt, %22, %44 : vector<128x128xi32>
    %46 = arith.select %45, %38, %41 : vector<128x128xi1>, vector<128x128xf32>
    %47 = arith.select %43, %21, %46 : vector<128x128xi1>, vector<128x128xf32>
    %c0_21 = arith.constant 0 : index
    %c0_22 = arith.constant 0 : index
    %48 = vector.load %arg8[%c0_21, %c0_22] : memref<128x128xf32, #tpu.memory_space<vmem>>, vector<128x128xf32>
    tpu.vector_store %arg8[%c0_21, %c0_22], %47 {strides = array<i32>} : memref<128x128xf32, #tpu.memory_space<vmem>>, vector<128x128xf32>,
    return
  }
  func.func @transform_0(%arg0: i32) -> (i32, i32) {
    %c0_i32 = arith.constant 0 : i32
    %c0_i32_0 = arith.constant 0 : i32
    return %arg0, %c0_i32 : i32, i32
  }
  func.func @transform_1(%arg0: i32) -> (i32, i32) {
    %c0_i32 = arith.constant 0 : i32
    %c0_i32_0 = arith.constant 0 : i32
    %c0_i32_1 = arith.constant 0 : i32
    return %c0_i32, %c0_i32_0 : i32, i32
  }
  func.func @transform_2(%arg0: i32) -> (i32, i32) {
    %c0_i32 = arith.constant 0 : i32
    %c0_i32_0 = arith.constant 0 : i32
    %c0_i32_1 = arith.constant 0 : i32
    return %c0_i32, %c0_i32_0 : i32, i32
  }
  func.func @transform_3(%arg0: i32) -> (i32, i32) {
    %c0_i32 = arith.constant 0 : i32
    %c0_i32_0 = arith.constant 0 : i32
    %c0_i32_1 = arith.constant 0 : i32
    return %c0_i32, %c0_i32_0 : i32, i32
  }
  func.func @transform_4(%arg0: i32) -> (i32, i32) {
    %c0_i32 = arith.constant 0 : i32
    %c0_i32_0 = arith.constant 0 : i32
    %c0_i32_1 = arith.constant 0 : i32
    return %c0_i32, %c0_i32_0 : i32, i32
  }
  func.func @transform_5(%arg0: i32) -> (i32, i32) {
    %c0_i32 = arith.constant 0 : i32
    %c0_i32_0 = arith.constant 0 : i32
    %c0_i32_1 = arith.constant 0 : i32
    return %c0_i32, %c0_i32_0 : i32, i32
  }
  func.func @transform_6(%arg0: i32) -> (i32, i32) {
    %c0_i32 = arith.constant 0 : i32
    %c0_i32_0 = arith.constant 0 : i32
    %c0_i32_1 = arith.constant 0 : i32
    return %c0_i32, %c0_i32_0 : i32, i32
  }
  func.func @transform_7(%arg0: i32) -> (i32, i32) {
    %c0_i32 = arith.constant 0 : i32
    %c0_i32_0 = arith.constant 0 : i32
    return %arg0, %c0_i32 : i32, i32
  }
}

</mosaic_0001>

<llo_original>
// kernel: tpu_custom_call.1
$region0: #{tpu_custom_call.1}
  #allocation0 [shape = 'u32[]', space=smem, size = 0x4, offset = 0x4, fixed_abs, tag = 'smem constant byte address 0x4 - core index']
  #allocation1 [shape = 'u32[144,128]{1,0:T(1,128)}', space=vmem, size = 0x12000, scoped, tag = 'internal scratch']
  %s0 = inlined_call_operand.vmem [shape: bf16[128,64], index: 0, kind: input, shape index: {}]
  %s1 = inlined_call_operand.vmem [shape: bf16[64,64], index: 1, kind: input, shape index: {}]
  %s2 = inlined_call_operand.vmem [shape: f32[1,64], index: 2, kind: input, shape index: {}]
  %s3 = inlined_call_operand.vmem [shape: bf16[64,64], index: 3, kind: input, shape index: {}]
  %s4 = inlined_call_operand.vmem [shape: f32[1,64], index: 4, kind: input, shape index: {}]
  %s5 = inlined_call_operand.vmem [shape: bf16[64,128], index: 5, kind: input, shape index: {}]
  %s6 = inlined_call_operand.vmem [shape: f32[1,128], index: 6, kind: input, shape index: {}]
  %s7 = inlined_call_operand.hbm [shape: f32[128,128], index: 7, kind: output, shape index: {}]
  %s8 = sld [smem:[#allocation0]]
  $region38: #{tpu_custom_call.1} parent=0
    _
  %s10 = ssub.s32 1, %s8
  %s11 = scalar_select 0, %s10, %s8
  $region1: #{tpu_custom_call.1} parent=0
    #allocation2 [shape = 'u8[65536]{0}', space=vmem, size = 0x10000, scoped, tag = 'output window, operand 0, single buffered']
    #allocation3 [shape = 's32[1]{0}', space=sflag, size = 0x4, scoped, tag = 'scoped memory for tpu_custom_call.1']
    %12 = vsyncpa [#allocation3], 0
    // Predicated region
    $region2: #{tpu_custom_call.1} parent=1 // pred_check
      _
    $region3: #{tpu_custom_call.1} parent=1 // pred_check_branch
      %14 = sbr.rel (0) target = $region5
    $region4: #{tpu_custom_call.1} parent=1 // pred_region
      _
    $region5: #{tpu_custom_call.1} parent=1 // pred_fallthru
      _
    // Predicated region
    $region6: #{tpu_custom_call.1} parent=1 // pred_check
      _
    $region7: #{tpu_custom_call.1} parent=1 // pred_check_branch
      %16 = sbr.rel (0) target = $region9
    $region8: #{tpu_custom_call.1} parent=1 // pred_region
      _
    $region9: #{tpu_custom_call.1} parent=1 // pred_fallthru
      _
    // Predicated region
    $region10: #{tpu_custom_call.1} parent=1 // pred_check
      _
    $region11: #{tpu_custom_call.1} parent=1 // pred_check_branch
      %18 = sbr.rel (0) target = $region13
    $region12: #{tpu_custom_call.1} parent=1 // pred_region
      _
    $region13: #{tpu_custom_call.1} parent=1 // pred_fallthru
      _
    // Predicated region
    $region14: #{tpu_custom_call.1} parent=1 // pred_check
      _
    $region15: #{tpu_custom_call.1} parent=1 // pred_check_branch
      %20 = sbr.rel (0) target = $region17
    $region16: #{tpu_custom_call.1} parent=1 // pred_region
      _
    $region17: #{tpu_custom_call.1} parent=1 // pred_fallthru
      _
    // Predicated region
    $region18: #{tpu_custom_call.1} parent=1 // pred_check
      _
    $region19: #{tpu_custom_call.1} parent=1 // pred_check_branch
      %22 = sbr.rel (0) target = $region21
    $region20: #{tpu_custom_call.1} parent=1 // pred_region
      _
    $region21: #{tpu_custom_call.1} parent=1 // pred_fallthru
      _
    // Predicated region
    $region22: #{tpu_custom_call.1} parent=1 // pred_check
      _
    $region23: #{tpu_custom_call.1} parent=1 // pred_check_branch
      %24 = sbr.rel (0) target = $region25
    $region24: #{tpu_custom_call.1} parent=1 // pred_region
      _
    $region25: #{tpu_custom_call.1} parent=1 // pred_fallthru
      _
    // Predicated region
    $region26: #{tpu_custom_call.1} parent=1 // pred_check
      _
    $region27: #{tpu_custom_call.1} parent=1 // pred_check_branch
      %26 = sbr.rel (0) target = $region29
    $region28: #{tpu_custom_call.1} parent=1 // pred_region
      _
    $region29: #{tpu_custom_call.1} parent=1 // pred_fallthru
      _
    %v28 = vld [vmem:[%s0] sm:$0xf]
    %v29 = vld [vmem:[%s0 + $0x4] sm:$0xf]
    %v30 = vld [vmem:[%s0 + $0x8] sm:$0xf]
    %v31 = vld [vmem:[%s0 + $0xc] sm:$0xf]
    %v32 = vld [vmem:[%s0 + $0x10] sm:$0xf]
    %v33 = vld [vmem:[%s0 + $0x14] sm:$0xf]
    %v34 = vld [vmem:[%s0 + $0x18] sm:$0xf]
    %v35 = vld [vmem:[%s0 + $0x1c] sm:$0xf]
    %v36 = vld [vmem:[%s0 + $0x20] sm:$0xf]
    %v37 = vld [vmem:[%s0 + $0x24] sm:$0xf]
    %v38 = vld [vmem:[%s0 + $0x28] sm:$0xf]
    %v39 = vld [vmem:[%s0 + $0x2c] sm:$0xf]
    %v40 = vld [vmem:[%s0 + $0x30] sm:$0xf]
    %v41 = vld [vmem:[%s0 + $0x34] sm:$0xf]
    %v42 = vld [vmem:[%s0 + $0x38] sm:$0xf]
    %v43 = vld [vmem:[%s0 + $0x3c] sm:$0xf]
    %v44 = vld [vmem:[%s1] sm:$0xf]
    %v45 = vld [vmem:[%s1 + $0x4] sm:$0xf]
    %v46 = vld [vmem:[%s1 + $0x8] sm:$0xf]
    %v47 = vld [vmem:[%s1 + $0xc] sm:$0xf]
    %v48 = vld [vmem:[%s1 + $0x10] sm:$0xf]
    %v49 = vld [vmem:[%s1 + $0x14] sm:$0xf]
    %v50 = vld [vmem:[%s1 + $0x18] sm:$0xf]
    %v51 = vld [vmem:[%s1 + $0x1c] sm:$0xf]
    %v52 = vld [vmem:[%s2] sm:$0x1]
    %v54 = vlaneseq
    %v55 = vshrl.u32 %v54, 7
    %v56 = vsub.s32 0, %v55
    %v57 = vrot.slane %v52, %v56
    %v75 = vunpack.c.l.b16 %v28
    %v76 = vunpack.c.l.b16 %v29
    %v77 = vunpack.c.l.b16 %v30
    %v78 = vunpack.c.l.b16 %v31
    %v79 = vunpack.c.l.b16 %v32
    %v80 = vunpack.c.l.b16 %v33
    %v81 = vunpack.c.l.b16 %v34
    %v82 = vunpack.c.l.b16 %v35
    %v83 = vunpack.c.l.b16 %v36
    %v84 = vunpack.c.l.b16 %v37
    %v85 = vunpack.c.l.b16 %v38
    %v86 = vunpack.c.l.b16 %v39
    %v87 = vunpack.c.l.b16 %v40
    %v88 = vunpack.c.l.b16 %v41
    %v89 = vunpack.c.l.b16 %v42
    %v90 = vunpack.c.l.b16 %v43
    %v91 = vpack.c.b16 %v76, %v75
    %v92 = vpack.c.b16 %v78, %v77
    %v93 = vpack.c.b16 %v80, %v79
    %v94 = vpack.c.b16 %v82, %v81
    %v95 = vpack.c.b16 %v84, %v83
    %v96 = vpack.c.b16 %v86, %v85
    %v97 = vpack.c.b16 %v88, %v87
    %v98 = vpack.c.b16 %v90, %v89
    %v107 = vunpack.c.l.b16 %v44
    %v108 = vunpack.c.l.b16 %v45
    %v109 = vunpack.c.l.b16 %v46
    %v110 = vunpack.c.l.b16 %v47
    %v111 = vunpack.c.l.b16 %v48
    %v112 = vunpack.c.l.b16 %v49
    %v113 = vunpack.c.l.b16 %v50
    %v114 = vunpack.c.l.b16 %v51
    %v115 = vpack.c.b16 %v108, %v107
    %v116 = vpack.c.b16 %v110, %v109
    %v117 = vpack.c.b16 %v112, %v111
    %v118 = vpack.c.b16 %v114, %v113
    %vm123 = vcmask 523264
    %v125 = vsel %vm123, %v91, 0
    %v128 = vsel %vm123, %v92, 0
    %v131 = vsel %vm123, %v93, 0
    %v134 = vsel %vm123, %v94, 0
    %v137 = vsel %vm123, %v95, 0
    %v140 = vsel %vm123, %v96, 0
    %v143 = vsel %vm123, %v97, 0
    %v146 = vsel %vm123, %v98, 0
    %148 = vmatprep.subr.bf16.mxu0 0
    %149 = vmatpush1.bf16.msra.mxu0 %v115
    %150 = vmatprep.subr.bf16.mxu0 0
    %151 = vmatpush1.bf16.msra.mxu0 %v116
    %152 = vmatprep.subr.bf16.mxu0 0
    %153 = vmatpush1.bf16.msra.mxu0 %v117
    %154 = vmatprep.subr.bf16.mxu0 0
    %155 = vmatpush1.bf16.msra.mxu0 %v118
    %156 = vmatprep.subr.bf16.mxu0 0
    %157 = vmatpush1.bf16.msra.mxu0 0
    %158 = vmatprep.subr.bf16.mxu0 0
    %159 = vmatpush1.bf16.msra.mxu0 0
    %160 = vmatprep.subr.bf16.mxu0 0
    %161 = vmatpush1.bf16.msra.mxu0 0
    %162 = vmatprep.subr.bf16.mxu0 0
    %163 = vmatpush1.bf16.msra.mxu0 0
    %164 = vmatprep.subr.bf16.mxu0 0
    %165 = vmatpush1.bf16.msra.mxu0 0
    %166 = vmatprep.subr.bf16.mxu0 0
    %167 = vmatpush1.bf16.msra.mxu0 0
    %168 = vmatprep.subr.bf16.mxu0 0
    %169 = vmatpush1.bf16.msra.mxu0 0
    %170 = vmatprep.subr.bf16.mxu0 0
    %171 = vmatpush1.bf16.msra.mxu0 0
    %172 = vmatprep.subr.bf16.mxu0 0
    %173 = vmatpush1.bf16.msra.mxu0 0
    %174 = vmatprep.subr.bf16.mxu0 0
    %175 = vmatpush1.bf16.msra.mxu0 0
    %176 = vmatprep.subr.bf16.mxu0 0
    %177 = vmatpush1.bf16.msra.mxu0 0
    %178 = vmatprep.subr.bf16.mxu0 0
    %179 = vmatpush1.bf16.msra.mxu0 0
    %180 = vmatprep.mubr.bf16.mxu0 0
    %181 = vmatmul.mubr.bf16.gmra.mrb[0].mxu0 %v125
    %v182 = vpop.f32.mrb[0].mxu0
    %v183 = vadd.f32 %v57, %v182
    %v184 = vpop.f32.mrb[0].mxu0
    %v185 = vpop.f32.mrb[0].mxu0
    %v186 = vadd.f32 %v57, %v185
    %v187 = vpop.f32.mrb[0].mxu0
    %188 = vmatprep.mubr.bf16.mxu0 0
    %189 = vmatmul.mubr.bf16.gmra.mrb[0].mxu0 %v128
    %v190 = vpop.f32.mrb[0].mxu0
    %v191 = vadd.f32 %v57, %v190
    %v192 = vpop.f32.mrb[0].mxu0
    %v193 = vpop.f32.mrb[0].mxu0
    %v194 = vadd.f32 %v57, %v193
    %v195 = vpop.f32.mrb[0].mxu0
    %196 = vmatprep.mubr.bf16.mxu0 0
    %197 = vmatmul.mubr.bf16.gmra.mrb[0].mxu0 %v131
    %v198 = vpop.f32.mrb[0].mxu0
    %v199 = vadd.f32 %v57, %v198
    %v200 = vpop.f32.mrb[0].mxu0
    %v201 = vpop.f32.mrb[0].mxu0
    %v202 = vadd.f32 %v57, %v201
    %v203 = vpop.f32.mrb[0].mxu0
    %204 = vmatprep.mubr.bf16.mxu0 0
    %205 = vmatmul.mubr.bf16.gmra.mrb[0].mxu0 %v134
    %v206 = vpop.f32.mrb[0].mxu0
    %v207 = vadd.f32 %v57, %v206
    %v208 = vpop.f32.mrb[0].mxu0
    %v209 = vpop.f32.mrb[0].mxu0
    %v210 = vadd.f32 %v57, %v209
    %v211 = vpop.f32.mrb[0].mxu0
    %212 = vmatprep.mubr.bf16.mxu0 0
    %213 = vmatmul.mubr.bf16.gmra.mrb[0].mxu0 %v137
    %v214 = vpop.f32.mrb[0].mxu0
    %v215 = vadd.f32 %v57, %v214
    %v216 = vpop.f32.mrb[0].mxu0
    %v217 = vpop.f32.mrb[0].mxu0
    %v218 = vadd.f32 %v57, %v217
    %v219 = vpop.f32.mrb[0].mxu0
    %220 = vmatprep.mubr.bf16.mxu0 0
    %221 = vmatmul.mubr.bf16.gmra.mrb[0].mxu0 %v140
    %v222 = vpop.f32.mrb[0].mxu0
    %v223 = vadd.f32 %v57, %v222
    %v224 = vpop.f32.mrb[0].mxu0
    %v225 = vpop.f32.mrb[0].mxu0
    %v226 = vadd.f32 %v57, %v225
    %v227 = vpop.f32.mrb[0].mxu0
    %228 = vmatprep.mubr.bf16.mxu0 0
    %229 = vmatmul.mubr.bf16.gmra.mrb[0].mxu0 %v143
    %v230 = vpop.f32.mrb[0].mxu0
    %v231 = vadd.f32 %v57, %v230
    %v232 = vpop.f32.mrb[0].mxu0
    %v233 = vpop.f32.mrb[0].mxu0
    %v234 = vadd.f32 %v57, %v233
    %v235 = vpop.f32.mrb[0].mxu0
    %236 = vmatprep.mubr.bf16.mxu0 0
    %237 = vmatmul.mubr.bf16.gmra.mrb[0].mxu0 %v146
    %v238 = vpop.f32.mrb[0].mxu0
    %v239 = vadd.f32 %v57, %v238
    %v240 = vpop.f32.mrb[0].mxu0
    %v241 = vpop.f32.mrb[0].mxu0
    %v242 = vadd.f32 %v57, %v241
    %v243 = vpop.f32.mrb[0].mxu0
    %244 = vdwg.mxu0
    %v245 = vmax.f32 %v183, 0.0
    %v246 = vmax.f32 %v186, 0.0
    %v247 = vmax.f32 %v191, 0.0
    %v248 = vmax.f32 %v194, 0.0
    %v249 = vmax.f32 %v199, 0.0
    %v250 = vmax.f32 %v202, 0.0
    %v251 = vmax.f32 %v207, 0.0
    %v252 = vmax.f32 %v210, 0.0
    %v253 = vmax.f32 %v215, 0.0
    %v254 = vmax.f32 %v218, 0.0
    %v255 = vmax.f32 %v223, 0.0
    %v256 = vmax.f32 %v226, 0.0
    %v257 = vmax.f32 %v231, 0.0
    %v258 = vmax.f32 %v234, 0.0
    %v259 = vmax.f32 %v239, 0.0
    %v260 = vmax.f32 %v242, 0.0
    %v261 = vpack.c.bf16 %v246, %v245
    %v262 = vpack.c.bf16 %v248, %v247
    %v263 = vpack.c.bf16 %v250, %v249
    %v264 = vpack.c.bf16 %v252, %v251
    %v265 = vpack.c.bf16 %v254, %v253
    %v266 = vpack.c.bf16 %v256, %v255
    %v267 = vpack.c.bf16 %v258, %v257
    %v268 = vpack.c.bf16 %v260, %v259
    %v269 = vld [vmem:[%s3] sm:$0xf]
    %v270 = vld [vmem:[%s3 + $0x4] sm:$0xf]
    %v271 = vld [vmem:[%s3 + $0x8] sm:$0xf]
    %v272 = vld [vmem:[%s3 + $0xc] sm:$0xf]
    %v273 = vld [vmem:[%s3 + $0x10] sm:$0xf]
    %v274 = vld [vmem:[%s3 + $0x14] sm:$0xf]
    %v275 = vld [vmem:[%s3 + $0x18] sm:$0xf]
    %v276 = vld [vmem:[%s3 + $0x1c] sm:$0xf]
    %v277 = vld [vmem:[%s4] sm:$0x1]
    %v279 = vlaneseq
    %v280 = vshrl.u32 %v279, 7
    %v281 = vsub.s32 0, %v280
    %v282 = vrot.slane %v277, %v281
    %v292 = vunpack.c.l.b16 %v269
    %v293 = vunpack.c.l.b16 %v270
    %v294 = vunpack.c.l.b16 %v271
    %v295 = vunpack.c.l.b16 %v272
    %v296 = vunpack.c.l.b16 %v273
    %v297 = vunpack.c.l.b16 %v274
    %v298 = vunpack.c.l.b16 %v275
    %v299 = vunpack.c.l.b16 %v276
    %v300 = vpack.c.b16 %v293, %v292
    %v301 = vpack.c.b16 %v295, %v294
    %v302 = vpack.c.b16 %v297, %v296
    %v303 = vpack.c.b16 %v299, %v298
    %v309 = vsel %vm123, %v261, 0
    %v312 = vsel %vm123, %v262, 0
    %v315 = vsel %vm123, %v263, 0
    %v318 = vsel %vm123, %v264, 0
    %v321 = vsel %vm123, %v265, 0
    %v324 = vsel %vm123, %v266, 0
    %v327 = vsel %vm123, %v267, 0
    %v330 = vsel %vm123, %v268, 0
    %332 = vmatprep.subr.bf16.mxu0 0
    %333 = vmatpush1.bf16.msra.mxu0 %v300
    %334 = vmatprep.subr.bf16.mxu0 0
    %335 = vmatpush1.bf16.msra.mxu0 %v301
    %336 = vmatprep.subr.bf16.mxu0 0
    %337 = vmatpush1.bf16.msra.mxu0 %v302
    %338 = vmatprep.subr.bf16.mxu0 0
    %339 = vmatpush1.bf16.msra.mxu0 %v303
    %340 = vmatprep.subr.bf16.mxu0 0
    %341 = vmatpush1.bf16.msra.mxu0 0
    %342 = vmatprep.subr.bf16.mxu0 0
    %343 = vmatpush1.bf16.msra.mxu0 0
    %344 = vmatprep.subr.bf16.mxu0 0
    %345 = vmatpush1.bf16.msra.mxu0 0
    %346 = vmatprep.subr.bf16.mxu0 0
    %347 = vmatpush1.bf16.msra.mxu0 0
    %348 = vmatprep.subr.bf16.mxu0 0
    %349 = vmatpush1.bf16.msra.mxu0 0
    %350 = vmatprep.subr.bf16.mxu0 0
    %351 = vmatpush1.bf16.msra.mxu0 0
    %352 = vmatprep.subr.bf16.mxu0 0
    %353 = vmatpush1.bf16.msra.mxu0 0
    %354 = vmatprep.subr.bf16.mxu0 0
    %355 = vmatpush1.bf16.msra.mxu0 0
    %356 = vmatprep.subr.bf16.mxu0 0
    %357 = vmatpush1.bf16.msra.mxu0 0
    %358 = vmatprep.subr.bf16.mxu0 0
    %359 = vmatpush1.bf16.msra.mxu0 0
    %360 = vmatprep.subr.bf16.mxu0 0
    %361 = vmatpush1.bf16.msra.mxu0 0
    %362 = vmatprep.subr.bf16.mxu0 0
    %363 = vmatpush1.bf16.msra.mxu0 0
    %364 = vmatprep.mubr.bf16.mxu0 0
    %365 = vmatmul.mubr.bf16.gmra.mrb[0].mxu0 %v309
    %v366 = vpop.f32.mrb[0].mxu0
    %v367 = vadd.f32 %v282, %v366
    %v368 = vpop.f32.mrb[0].mxu0
    %v369 = vpop.f32.mrb[0].mxu0
    %v370 = vadd.f32 %v282, %v369
    %v371 = vpop.f32.mrb[0].mxu0
    %372 = vmatprep.mubr.bf16.mxu0 0
    %373 = vmatmul.mubr.bf16.gmra.mrb[0].mxu0 %v312
    %v374 = vpop.f32.mrb[0].mxu0
    %v375 = vadd.f32 %v282, %v374
    %v376 = vpop.f32.mrb[0].mxu0
    %v377 = vpop.f32.mrb[0].mxu0
    %v378 = vadd.f32 %v282, %v377
    %v379 = vpop.f32.mrb[0].mxu0
    %380 = vmatprep.mubr.bf16.mxu0 0
    %381 = vmatmul.mubr.bf16.gmra.mrb[0].mxu0 %v315
    %v382 = vpop.f32.mrb[0].mxu0
    %v383 = vadd.f32 %v282, %v382
    %v384 = vpop.f32.mrb[0].mxu0
    %v385 = vpop.f32.mrb[0].mxu0
    %v386 = vadd.f32 %v282, %v385
    %v387 = vpop.f32.mrb[0].mxu0
    %388 = vmatprep.mubr.bf16.mxu0 0
    %389 = vmatmul.mubr.bf16.gmra.mrb[0].mxu0 %v318
    %v390 = vpop.f32.mrb[0].mxu0
    %v391 = vadd.f32 %v282, %v390
    %v392 = vpop.f32.mrb[0].mxu0
    %v393 = vpop.f32.mrb[0].mxu0
    %v394 = vadd.f32 %v282, %v393
    %v395 = vpop.f32.mrb[0].mxu0
    %396 = vmatprep.mubr.bf16.mxu0 0
    %397 = vmatmul.mubr.bf16.gmra.mrb[0].mxu0 %v321
    %v398 = vpop.f32.mrb[0].mxu0
    %v399 = vadd.f32 %v282, %v398
    %v400 = vpop.f32.mrb[0].mxu0
    %v401 = vpop.f32.mrb[0].mxu0
    %v402 = vadd.f32 %v282, %v401
    %v403 = vpop.f32.mrb[0].mxu0
    %404 = vmatprep.mubr.bf16.mxu0 0
    %405 = vmatmul.mubr.bf16.gmra.mrb[0].mxu0 %v324
    %v406 = vpop.f32.mrb[0].mxu0
    %v407 = vadd.f32 %v282, %v406
    %v408 = vpop.f32.mrb[0].mxu0
    %v409 = vpop.f32.mrb[0].mxu0
    %v410 = vadd.f32 %v282, %v409
    %v411 = vpop.f32.mrb[0].mxu0
    %412 = vmatprep.mubr.bf16.mxu0 0
    %413 = vmatmul.mubr.bf16.gmra.mrb[0].mxu0 %v327
    %v414 = vpop.f32.mrb[0].mxu0
    %v415 = vadd.f32 %v282, %v414
    %v416 = vpop.f32.mrb[0].mxu0
    %v417 = vpop.f32.mrb[0].mxu0
    %v418 = vadd.f32 %v282, %v417
    %v419 = vpop.f32.mrb[0].mxu0
    %420 = vmatprep.mubr.bf16.mxu0 0
    %421 = vmatmul.mubr.bf16.gmra.mrb[0].mxu0 %v330
    %v422 = vpop.f32.mrb[0].mxu0
    %v423 = vadd.f32 %v282, %v422
    %v424 = vpop.f32.mrb[0].mxu0
    %v425 = vpop.f32.mrb[0].mxu0
    %v426 = vadd.f32 %v282, %v425
    %v427 = vpop.f32.mrb[0].mxu0
    %428 = vdwg.mxu0
    %v429 = vmax.f32 %v367, 0.0
    %v430 = vmax.f32 %v370, 0.0
    %v431 = vmax.f32 %v375, 0.0
    %v432 = vmax.f32 %v378, 0.0
    %v433 = vmax.f32 %v383, 0.0
    %v434 = vmax.f32 %v386, 0.0
    %v435 = vmax.f32 %v391, 0.0
    %v436 = vmax.f32 %v394, 0.0
    %v437 = vmax.f32 %v399, 0.0
    %v438 = vmax.f32 %v402, 0.0
    %v439 = vmax.f32 %v407, 0.0
    %v440 = vmax.f32 %v410, 0.0
    %v441 = vmax.f32 %v415, 0.0
    %v442 = vmax.f32 %v418, 0.0
    %v443 = vmax.f32 %v423, 0.0
    %v444 = vmax.f32 %v426, 0.0
    %v445 = vpack.c.bf16 %v430, %v429
    %v446 = vpack.c.bf16 %v432, %v431
    %v447 = vpack.c.bf16 %v434, %v433
    %v448 = vpack.c.bf16 %v436, %v435
    %v449 = vpack.c.bf16 %v438, %v437
    %v450 = vpack.c.bf16 %v440, %v439
    %v451 = vpack.c.bf16 %v442, %v441
    %v452 = vpack.c.bf16 %v444, %v443
    %v453 = vld [vmem:[%s5] sm:$0xf]
    %v454 = vld [vmem:[%s5 + $0x4] sm:$0xf]
    %v455 = vld [vmem:[%s5 + $0x8] sm:$0xf]
    %v456 = vld [vmem:[%s5 + $0xc] sm:$0xf]
    %v457 = vld [vmem:[%s5 + $0x10] sm:$0xf]
    %v458 = vld [vmem:[%s5 + $0x14] sm:$0xf]
    %v459 = vld [vmem:[%s5 + $0x18] sm:$0xf]
    %v460 = vld [vmem:[%s5 + $0x1c] sm:$0xf]
    %v461 = vld [vmem:[%s6] sm:$0x1]
    %v463 = vlaneseq
    %v464 = vshrl.u32 %v463, 7
    %v465 = vsub.s32 0, %v464
    %v466 = vrot.slane %v461, %v465
    %v476 = vunpack.c.l.b16 %v453
    %v477 = vunpack.c.l.b16 %v454
    %v478 = vunpack.c.l.b16 %v455
    %v479 = vunpack.c.l.b16 %v456
    %v480 = vunpack.c.l.b16 %v457
    %v481 = vunpack.c.l.b16 %v458
    %v482 = vunpack.c.l.b16 %v459
    %v483 = vunpack.c.l.b16 %v460
    %v484 = vpack.c.b16 %v477, %v476
    %v485 = vpack.c.b16 %v479, %v478
    %v486 = vpack.c.b16 %v481, %v480
    %v487 = vpack.c.b16 %v483, %v482
    %v493 = vsel %vm123, %v445, 0
    %v496 = vsel %vm123, %v446, 0
    %v499 = vsel %vm123, %v447, 0
    %v502 = vsel %vm123, %v448, 0
    %v505 = vsel %vm123, %v449, 0
    %v508 = vsel %vm123, %v450, 0
    %v511 = vsel %vm123, %v451, 0
    %v514 = vsel %vm123, %v452, 0
    %516 = vmatprep.subr.bf16.mxu0 0
    %517 = vmatpush1.bf16.msra.mxu0 %v484
    %518 = vmatprep.subr.bf16.mxu0 0
    %519 = vmatpush1.bf16.msra.mxu0 %v485
    %520 = vmatprep.subr.bf16.mxu0 0
    %521 = vmatpush1.bf16.msra.mxu0 %v486
    %522 = vmatprep.subr.bf16.mxu0 0
    %523 = vmatpush1.bf16.msra.mxu0 %v487
    %524 = vmatprep.subr.bf16.mxu0 0
    %525 = vmatpush1.bf16.msra.mxu0 0
    %526 = vmatprep.subr.bf16.mxu0 0
    %527 = vmatpush1.bf16.msra.mxu0 0
    %528 = vmatprep.subr.bf16.mxu0 0
    %529 = vmatpush1.bf16.msra.mxu0 0
    %530 = vmatprep.subr.bf16.mxu0 0
    %531 = vmatpush1.bf16.msra.mxu0 0
    %532 = vmatprep.subr.bf16.mxu0 0
    %533 = vmatpush1.bf16.msra.mxu0 0
    %534 = vmatprep.subr.bf16.mxu0 0
    %535 = vmatpush1.bf16.msra.mxu0 0
    %536 = vmatprep.subr.bf16.mxu0 0
    %537 = vmatpush1.bf16.msra.mxu0 0
    %538 = vmatprep.subr.bf16.mxu0 0
    %539 = vmatpush1.bf16.msra.mxu0 0
    %540 = vmatprep.subr.bf16.mxu0 0
    %541 = vmatpush1.bf16.msra.mxu0 0
    %542 = vmatprep.subr.bf16.mxu0 0
    %543 = vmatpush1.bf16.msra.mxu0 0
    %544 = vmatprep.subr.bf16.mxu0 0
    %545 = vmatpush1.bf16.msra.mxu0 0
    %546 = vmatprep.subr.bf16.mxu0 0
    %547 = vmatpush1.bf16.msra.mxu0 0
    %548 = vmatprep.mubr.bf16.mxu0 0
    %549 = vmatmul.mubr.bf16.gmra.mrb[0].mxu0 %v493
    %v550 = vpop.f32.mrb[0].mxu0
    %v551 = vadd.f32 %v466, %v550
    %v552 = vpop.f32.mrb[0].mxu0
    %v553 = vpop.f32.mrb[0].mxu0
    %v554 = vadd.f32 %v466, %v553
    %v555 = vpop.f32.mrb[0].mxu0
    %556 = vmatprep.mubr.bf16.mxu0 0
    %557 = vmatmul.mubr.bf16.gmra.mrb[0].mxu0 %v496
    %v558 = vpop.f32.mrb[0].mxu0
    %v559 = vadd.f32 %v466, %v558
    %v560 = vpop.f32.mrb[0].mxu0
    %v561 = vpop.f32.mrb[0].mxu0
    %v562 = vadd.f32 %v466, %v561
    %v563 = vpop.f32.mrb[0].mxu0
    %564 = vmatprep.mubr.bf16.mxu0 0
    %565 = vmatmul.mubr.bf16.gmra.mrb[0].mxu0 %v499
    %v566 = vpop.f32.mrb[0].mxu0
    %v567 = vadd.f32 %v466, %v566
    %v568 = vpop.f32.mrb[0].mxu0
    %v569 = vpop.f32.mrb[0].mxu0
    %v570 = vadd.f32 %v466, %v569
    %v571 = vpop.f32.mrb[0].mxu0
    %572 = vmatprep.mubr.bf16.mxu0 0
    %573 = vmatmul.mubr.bf16.gmra.mrb[0].mxu0 %v502
    %v574 = vpop.f32.mrb[0].mxu0
    %v575 = vadd.f32 %v466, %v574
    %v576 = vpop.f32.mrb[0].mxu0
    %v577 = vpop.f32.mrb[0].mxu0
    %v578 = vadd.f32 %v466, %v577
    %v579 = vpop.f32.mrb[0].mxu0
    %580 = vmatprep.mubr.bf16.mxu0 0
    %581 = vmatmul.mubr.bf16.gmra.mrb[0].mxu0 %v505
    %v582 = vpop.f32.mrb[0].mxu0
    %v583 = vadd.f32 %v466, %v582
    %v584 = vpop.f32.mrb[0].mxu0
    %v585 = vpop.f32.mrb[0].mxu0
    %v586 = vadd.f32 %v466, %v585
    %v587 = vpop.f32.mrb[0].mxu0
    %588 = vmatprep.mubr.bf16.mxu0 0
    %589 = vmatmul.mubr.bf16.gmra.mrb[0].mxu0 %v508
    %v590 = vpop.f32.mrb[0].mxu0
    %v591 = vadd.f32 %v466, %v590
    %v592 = vpop.f32.mrb[0].mxu0
    %v593 = vpop.f32.mrb[0].mxu0
    %v594 = vadd.f32 %v466, %v593
    %v595 = vpop.f32.mrb[0].mxu0
    %596 = vmatprep.mubr.bf16.mxu0 0
    %597 = vmatmul.mubr.bf16.gmra.mrb[0].mxu0 %v511
    %v598 = vpop.f32.mrb[0].mxu0
    %v599 = vadd.f32 %v466, %v598
    %v600 = vpop.f32.mrb[0].mxu0
    %v601 = vpop.f32.mrb[0].mxu0
    %v602 = vadd.f32 %v466, %v601
    %v603 = vpop.f32.mrb[0].mxu0
    %604 = vmatprep.mubr.bf16.mxu0 0
    %605 = vmatmul.mubr.bf16.gmra.mrb[0].mxu0 %v514
    %v606 = vpop.f32.mrb[0].mxu0
    %v607 = vadd.f32 %v466, %v606
    %v608 = vpop.f32.mrb[0].mxu0
    %v609 = vpop.f32.mrb[0].mxu0
    %v610 = vadd.f32 %v466, %v609
    %v611 = vpop.f32.mrb[0].mxu0
    %612 = vdwg.mxu0
    %v613 = vlaneseq
    %v614 = vand.u32 %v613, 127
    %v615 = vmax.f32 %v551, 0.0
    %v616 = vmax.f32 %v554, 0.0
    %v617 = vmax.f32 %v559, 0.0
    %v618 = vmax.f32 %v562, 0.0
    %v619 = vmax.f32 %v567, 0.0
    %v620 = vmax.f32 %v570, 0.0
    %v621 = vmax.f32 %v575, 0.0
    %v622 = vmax.f32 %v578, 0.0
    %v623 = vmax.f32 %v583, 0.0
    %v624 = vmax.f32 %v586, 0.0
    %v625 = vmax.f32 %v591, 0.0
    %v626 = vmax.f32 %v594, 0.0
    %v627 = vmax.f32 %v599, 0.0
    %v628 = vmax.f32 %v602, 0.0
    %v629 = vmax.f32 %v607, 0.0
    %v630 = vmax.f32 %v610, 0.0
    %vm631 = vcmp.ne.f32.partialorder %v551, %v551
    %vm632 = vcmp.ne.f32.partialorder %v554, %v554
    %vm633 = vcmp.ne.f32.partialorder %v559, %v559
    %vm634 = vcmp.ne.f32.partialorder %v562, %v562
    %vm635 = vcmp.ne.f32.partialorder %v567, %v567
    %vm636 = vcmp.ne.f32.partialorder %v570, %v570
    %vm637 = vcmp.ne.f32.partialorder %v575, %v575
    %vm638 = vcmp.ne.f32.partialorder %v578, %v578
    %vm639 = vcmp.ne.f32.partialorder %v583, %v583
    %vm640 = vcmp.ne.f32.partialorder %v586, %v586
    %vm641 = vcmp.ne.f32.partialorder %v591, %v591
    %vm642 = vcmp.ne.f32.partialorder %v594, %v594
    %vm643 = vcmp.ne.f32.partialorder %v599, %v599
    %vm644 = vcmp.ne.f32.partialorder %v602, %v602
    %vm645 = vcmp.ne.f32.partialorder %v607, %v607
    %vm646 = vcmp.ne.f32.partialorder %v610, %v610
    %v647 = vadd.f32 %v551, 0.0
    %v648 = vadd.f32 %v554, 0.0
    %v649 = vadd.f32 %v559, 0.0
    %v650 = vadd.f32 %v562, 0.0
    %v651 = vadd.f32 %v567, 0.0
    %v652 = vadd.f32 %v570, 0.0
    %v653 = vadd.f32 %v575, 0.0
    %v654 = vadd.f32 %v578, 0.0
    %v655 = vadd.f32 %v583, 0.0
    %v656 = vadd.f32 %v586, 0.0
    %v657 = vadd.f32 %v591, 0.0
    %v658 = vadd.f32 %v594, 0.0
    %v659 = vadd.f32 %v599, 0.0
    %v660 = vadd.f32 %v602, 0.0
    %v661 = vadd.f32 %v607, 0.0
    %v662 = vadd.f32 %v610, 0.0
    %v663 = vand.u32 2147483647, %v551
    %v664 = vand.u32 2147483647, %v554
    %v665 = vand.u32 2147483647, %v559
    %v666 = vand.u32 2147483647, %v562
    %v667 = vand.u32 2147483647, %v567
    %v668 = vand.u32 2147483647, %v570
    %v669 = vand.u32 2147483647, %v575
    %v670 = vand.u32 2147483647, %v578
    %v671 = vand.u32 2147483647, %v583
    %v672 = vand.u32 2147483647, %v586
    %v673 = vand.u32 2147483647, %v591
    %v674 = vand.u32 2147483647, %v594
    %v675 = vand.u32 2147483647, %v599
    %v676 = vand.u32 2147483647, %v602
    %v677 = vand.u32 2147483647, %v607
    %v678 = vand.u32 2147483647, %v610
    %v679 = vsub.f32 0.0, %v663
    %v680 = vsub.f32 0.0, %v664
    %v681 = vsub.f32 0.0, %v665
    %v682 = vsub.f32 0.0, %v666
    %v683 = vsub.f32 0.0, %v667
    %v684 = vsub.f32 0.0, %v668
    %v685 = vsub.f32 0.0, %v669
    %v686 = vsub.f32 0.0, %v670
    %v687 = vsub.f32 0.0, %v671
    %v688 = vsub.f32 0.0, %v672
    %v689 = vsub.f32 0.0, %v673
    %v690 = vsub.f32 0.0, %v674
    %v691 = vsub.f32 0.0, %v675
    %v692 = vsub.f32 0.0, %v676
    %v693 = vsub.f32 0.0, %v677
    %v694 = vsub.f32 0.0, %v678
    %v695 = vmul.f32 %v679, 1.442695
    %v696 = vpow.pop %v695
    %v697 = vmul.f32 %v680, 1.442695
    %v698 = vpow.pop %v697
    %v699 = vmul.f32 %v681, 1.442695
    %v700 = vpow.pop %v699
    %v701 = vmul.f32 %v682, 1.442695
    %v702 = vpow.pop %v701
    %v703 = vmul.f32 %v683, 1.442695
    %v704 = vpow.pop %v703
    %v705 = vmul.f32 %v684, 1.442695
    %v706 = vpow.pop %v705
    %v707 = vmul.f32 %v685, 1.442695
    %v708 = vpow.pop %v707
    %v709 = vmul.f32 %v686, 1.442695
    %v710 = vpow.pop %v709
    %v711 = vmul.f32 %v687, 1.442695
    %v712 = vpow.pop %v711
    %v713 = vmul.f32 %v688, 1.442695
    %v714 = vpow.pop %v713
    %v715 = vmul.f32 %v689, 1.442695
    %v716 = vpow.pop %v715
    %v717 = vmul.f32 %v690, 1.442695
    %v718 = vpow.pop %v717
    %v719 = vmul.f32 %v691, 1.442695
    %v720 = vpow.pop %v719
    %v721 = vmul.f32 %v692, 1.442695
    %v722 = vpow.pop %v721
    %v723 = vmul.f32 %v693, 1.442695
    %v724 = vpow.pop %v723
    %v725 = vmul.f32 %v694, 1.442695
    %v726 = vpow.pop %v725
    %v727 = vadd.f32 %v696, 1.0
    %v728 = vlog2.pop %v727
    %v729 = vmul.f32 %v728, 0.6931472
    %v730 = vmul.f32 -0.5, %v696
    %v731 = vadd.f32 %v730, 1.0
    %v732 = vmul.f32 %v731, %v696
    %v733 = vand.u32 2147483647, %v696
    %vm734 = vcmp.lt.f32.partialorder %v733, 0.0004427343
    %v735 = vsel %vm734, %v732, %v729
    %v736 = vadd.f32 %v698, 1.0
    %v737 = vlog2.pop %v736
    %v738 = vmul.f32 %v737, 0.6931472
    %v739 = vmul.f32 -0.5, %v698
    %v740 = vadd.f32 %v739, 1.0
    %v741 = vmul.f32 %v740, %v698
    %v742 = vand.u32 2147483647, %v698
    %vm743 = vcmp.lt.f32.partialorder %v742, 0.0004427343
    %v744 = vsel %vm743, %v741, %v738
    %v745 = vadd.f32 %v700, 1.0
    %v746 = vlog2.pop %v745
    %v747 = vmul.f32 %v746, 0.6931472
    %v748 = vmul.f32 -0.5, %v700
    %v749 = vadd.f32 %v748, 1.0
    %v750 = vmul.f32 %v749, %v700
    %v751 = vand.u32 2147483647, %v700
    %vm752 = vcmp.lt.f32.partialorder %v751, 0.0004427343
    %v753 = vsel %vm752, %v750, %v747
    %v754 = vadd.f32 %v702, 1.0
    %v755 = vlog2.pop %v754
    %v756 = vmul.f32 %v755, 0.6931472
    %v757 = vmul.f32 -0.5, %v702
    %v758 = vadd.f32 %v757, 1.0
    %v759 = vmul.f32 %v758, %v702
    %v760 = vand.u32 2147483647, %v702
    %vm761 = vcmp.lt.f32.partialorder %v760, 0.0004427343
    %v762 = vsel %vm761, %v759, %v756
    %v763 = vadd.f32 %v704, 1.0
    %v764 = vlog2.pop %v763
    %v765 = vmul.f32 %v764, 0.6931472
    %v766 = vmul.f32 -0.5, %v704
    %v767 = vadd.f32 %v766, 1.0
    %v768 = vmul.f32 %v767, %v704
    %v769 = vand.u32 2147483647, %v704
    %vm770 = vcmp.lt.f32.partialorder %v769, 0.0004427343
    %v771 = vsel %vm770, %v768, %v765
    %v772 = vadd.f32 %v706, 1.0
    %v773 = vlog2.pop %v772
    %v774 = vmul.f32 %v773, 0.6931472
    %v775 = vmul.f32 -0.5, %v706
    %v776 = vadd.f32 %v775, 1.0
    %v777 = vmul.f32 %v776, %v706
    %v778 = vand.u32 2147483647, %v706
    %vm779 = vcmp.lt.f32.partialorder %v778, 0.0004427343
    %v780 = vsel %vm779, %v777, %v774
    %v781 = vadd.f32 %v708, 1.0
    %v782 = vlog2.pop %v781
    %v783 = vmul.f32 %v782, 0.6931472
    %v784 = vmul.f32 -0.5, %v708
    %v785 = vadd.f32 %v784, 1.0
    %v786 = vmul.f32 %v785, %v708
    %v787 = vand.u32 2147483647, %v708
    %vm788 = vcmp.lt.f32.partialorder %v787, 0.0004427343
    %v789 = vsel %vm788, %v786, %v783
    %v790 = vadd.f32 %v710, 1.0
    %v791 = vlog2.pop %v790
    %v792 = vmul.f32 %v791, 0.6931472
    %v793 = vmul.f32 -0.5, %v710
    %v794 = vadd.f32 %v793, 1.0
    %v795 = vmul.f32 %v794, %v710
    %v796 = vand.u32 2147483647, %v710
    %vm797 = vcmp.lt.f32.partialorder %v796, 0.0004427343
    %v798 = vsel %vm797, %v795, %v792
    %v799 = vadd.f32 %v712, 1.0
    %v800 = vlog2.pop %v799
    %v801 = vmul.f32 %v800, 0.6931472
    %v802 = vmul.f32 -0.5, %v712
    %v803 = vadd.f32 %v802, 1.0
    %v804 = vmul.f32 %v803, %v712
    %v805 = vand.u32 2147483647, %v712
    %vm806 = vcmp.lt.f32.partialorder %v805, 0.0004427343
    %v807 = vsel %vm806, %v804, %v801
    %v808 = vadd.f32 %v714, 1.0
    %v809 = vlog2.pop %v808
    %v810 = vmul.f32 %v809, 0.6931472
    %v811 = vmul.f32 -0.5, %v714
    %v812 = vadd.f32 %v811, 1.0
    %v813 = vmul.f32 %v812, %v714
    %v814 = vand.u32 2147483647, %v714
    %vm815 = vcmp.lt.f32.partialorder %v814, 0.0004427343
    %v816 = vsel %vm815, %v813, %v810
    %v817 = vadd.f32 %v716, 1.0
    %v818 = vlog2.pop %v817
    %v819 = vmul.f32 %v818, 0.6931472
    %v820 = vmul.f32 -0.5, %v716
    %v821 = vadd.f32 %v820, 1.0
    %v822 = vmul.f32 %v821, %v716
    %v823 = vand.u32 2147483647, %v716
    %vm824 = vcmp.lt.f32.partialorder %v823, 0.0004427343
    %v825 = vsel %vm824, %v822, %v819
    %v826 = vadd.f32 %v718, 1.0
    %v827 = vlog2.pop %v826
    %v828 = vmul.f32 %v827, 0.6931472
    %v829 = vmul.f32 -0.5, %v718
    %v830 = vadd.f32 %v829, 1.0
    %v831 = vmul.f32 %v830, %v718
    %v832 = vand.u32 2147483647, %v718
    %vm833 = vcmp.lt.f32.partialorder %v832, 0.0004427343
    %v834 = vsel %vm833, %v831, %v828
    %v835 = vadd.f32 %v720, 1.0
    %v836 = vlog2.pop %v835
    %v837 = vmul.f32 %v836, 0.6931472
    %v838 = vmul.f32 -0.5, %v720
    %v839 = vadd.f32 %v838, 1.0
    %v840 = vmul.f32 %v839, %v720
    %v841 = vand.u32 2147483647, %v720
    %vm842 = vcmp.lt.f32.partialorder %v841, 0.0004427343
    %v843 = vsel %vm842, %v840, %v837
    %v844 = vadd.f32 %v722, 1.0
    %v845 = vlog2.pop %v844
    %v846 = vmul.f32 %v845, 0.6931472
    %v847 = vmul.f32 -0.5, %v722
    %v848 = vadd.f32 %v847, 1.0
    %v849 = vmul.f32 %v848, %v722
    %v850 = vand.u32 2147483647, %v722
    %vm851 = vcmp.lt.f32.partialorder %v850, 0.0004427343
    %v852 = vsel %vm851, %v849, %v846
    %v853 = vadd.f32 %v724, 1.0
    %v854 = vlog2.pop %v853
    %v855 = vmul.f32 %v854, 0.6931472
    %v856 = vmul.f32 -0.5, %v724
    %v857 = vadd.f32 %v856, 1.0
    %v858 = vmul.f32 %v857, %v724
    %v859 = vand.u32 2147483647, %v724
    %vm860 = vcmp.lt.f32.partialorder %v859, 0.0004427343
    %v861 = vsel %vm860, %v858, %v855
    %v862 = vadd.f32 %v726, 1.0
    %v863 = vlog2.pop %v862
    %v864 = vmul.f32 %v863, 0.6931472
    %v865 = vmul.f32 -0.5, %v726
    %v866 = vadd.f32 %v865, 1.0
    %v867 = vmul.f32 %v866, %v726
    %v868 = vand.u32 2147483647, %v726
    %vm869 = vcmp.lt.f32.partialorder %v868, 0.0004427343
    %v870 = vsel %vm869, %v867, %v864
    %v871 = vadd.f32 %v615, %v735
    %v872 = vadd.f32 %v616, %v744
    %v873 = vadd.f32 %v617, %v753
    %v874 = vadd.f32 %v618, %v762
    %v875 = vadd.f32 %v619, %v771
    %v876 = vadd.f32 %v620, %v780
    %v877 = vadd.f32 %v621, %v789
    %v878 = vadd.f32 %v622, %v798
    %v879 = vadd.f32 %v623, %v807
    %v880 = vadd.f32 %v624, %v816
    %v881 = vadd.f32 %v625, %v825
    %v882 = vadd.f32 %v626, %v834
    %v883 = vadd.f32 %v627, %v843
    %v884 = vadd.f32 %v628, %v852
    %v885 = vadd.f32 %v629, %v861
    %v886 = vadd.f32 %v630, %v870
    %v887 = vsel %vm631, %v647, %v871
    %v888 = vsel %vm632, %v648, %v872
    %v889 = vsel %vm633, %v649, %v873
    %v890 = vsel %vm634, %v650, %v874
    %v891 = vsel %vm635, %v651, %v875
    %v892 = vsel %vm636, %v652, %v876
    %v893 = vsel %vm637, %v653, %v877
    %v894 = vsel %vm638, %v654, %v878
    %v895 = vsel %vm639, %v655, %v879
    %v896 = vsel %vm640, %v656, %v880
    %v897 = vsel %vm641, %v657, %v881
    %v898 = vsel %vm642, %v658, %v882
    %v899 = vsel %vm643, %v659, %v883
    %v900 = vsel %vm644, %v660, %v884
    %v901 = vsel %vm645, %v661, %v885
    %v902 = vsel %vm646, %v662, %v886
    %v903 = vadd.f32 %v887, 0.01
    %v904 = vadd.f32 %v888, 0.01
    %v905 = vadd.f32 %v889, 0.01
    %v906 = vadd.f32 %v890, 0.01
    %v907 = vadd.f32 %v891, 0.01
    %v908 = vadd.f32 %v892, 0.01
    %v909 = vadd.f32 %v893, 0.01
    %v910 = vadd.f32 %v894, 0.01
    %v911 = vadd.f32 %v895, 0.01
    %v912 = vadd.f32 %v896, 0.01
    %v913 = vadd.f32 %v897, 0.01
    %v914 = vadd.f32 %v898, 0.01
    %v915 = vadd.f32 %v899, 0.01
    %v916 = vadd.f32 %v900, 0.01
    %v917 = vadd.f32 %v901, 0.01
    %v918 = vadd.f32 %v902, 0.01
    %v919 = vtanh.pop %v551
    %v920 = vtanh.pop %v554
    %v921 = vtanh.pop %v559
    %v922 = vtanh.pop %v562
    %v923 = vtanh.pop %v567
    %v924 = vtanh.pop %v570
    %v925 = vtanh.pop %v575
    %v926 = vtanh.pop %v578
    %v927 = vtanh.pop %v583
    %v928 = vtanh.pop %v586
    %v929 = vtanh.pop %v591
    %v930 = vtanh.pop %v594
    %v931 = vtanh.pop %v599
    %v932 = vtanh.pop %v602
    %v933 = vtanh.pop %v607
    %v934 = vtanh.pop %v610
    %v935 = vmul.f32 %v919, 0.9
    %v936 = vmul.f32 %v920, 0.9
    %v937 = vmul.f32 %v921, 0.9
    %v938 = vmul.f32 %v922, 0.9
    %v939 = vmul.f32 %v923, 0.9
    %v940 = vmul.f32 %v924, 0.9
    %v941 = vmul.f32 %v925, 0.9
    %v942 = vmul.f32 %v926, 0.9
    %v943 = vmul.f32 %v927, 0.9
    %v944 = vmul.f32 %v928, 0.9
    %v945 = vmul.f32 %v929, 0.9
    %v946 = vmul.f32 %v930, 0.9
    %v947 = vmul.f32 %v931, 0.9
    %v948 = vmul.f32 %v932, 0.9
    %v949 = vmul.f32 %v933, 0.9
    %v950 = vmul.f32 %v934, 0.9
    %vm951 = vcmp.lt.s32.totalorder %v614, 2
    %vm952 = vcmp.lt.s32.totalorder %v614, 4
    %v953 = vsel %vm952, %v903, %v935
    %v954 = vsel %vm952, %v904, %v936
    %v955 = vsel %vm952, %v905, %v937
    %v956 = vsel %vm952, %v906, %v938
    %v957 = vsel %vm952, %v907, %v939
    %v958 = vsel %vm952, %v908, %v940
    %v959 = vsel %vm952, %v909, %v941
    %v960 = vsel %vm952, %v910, %v942
    %v961 = vsel %vm952, %v911, %v943
    %v962 = vsel %vm952, %v912, %v944
    %v963 = vsel %vm952, %v913, %v945
    %v964 = vsel %vm952, %v914, %v946
    %v965 = vsel %vm952, %v915, %v947
    %v966 = vsel %vm952, %v916, %v948
    %v967 = vsel %vm952, %v917, %v949
    %v968 = vsel %vm952, %v918, %v950
    %v969 = vsel %vm951, %v551, %v953
    %v970 = vsel %vm951, %v554, %v954
    %v971 = vsel %vm951, %v559, %v955
    %v972 = vsel %vm951, %v562, %v956
    %v973 = vsel %vm951, %v567, %v957
    %v974 = vsel %vm951, %v570, %v958
    %v975 = vsel %vm951, %v575, %v959
    %v976 = vsel %vm951, %v578, %v960
    %v977 = vsel %vm951, %v583, %v961
    %v978 = vsel %vm951, %v586, %v962
    %v979 = vsel %vm951, %v591, %v963
    %v980 = vsel %vm951, %v594, %v964
    %v981 = vsel %vm951, %v599, %v965
    %v982 = vsel %vm951, %v602, %v966
    %v983 = vsel %vm951, %v607, %v967
    %v984 = vsel %vm951, %v610, %v968
    %985 = vst [vmem:[#allocation2] sm:$0xff] %v969
    %986 = vst [vmem:[#allocation2 + $0x8] sm:$0xff] %v970
    %987 = vst [vmem:[#allocation2 + $0x10] sm:$0xff] %v971
    %988 = vst [vmem:[#allocation2 + $0x18] sm:$0xff] %v972
    %989 = vst [vmem:[#allocation2 + $0x20] sm:$0xff] %v973
    %990 = vst [vmem:[#allocation2 + $0x28] sm:$0xff] %v974
    %991 = vst [vmem:[#allocation2 + $0x30] sm:$0xff] %v975
    %992 = vst [vmem:[#allocation2 + $0x38] sm:$0xff] %v976
    %993 = vst [vmem:[#allocation2 + $0x40] sm:$0xff] %v977
    %994 = vst [vmem:[#allocation2 + $0x48] sm:$0xff] %v978
    %995 = vst [vmem:[#allocation2 + $0x50] sm:$0xff] %v979
    %996 = vst [vmem:[#allocation2 + $0x58] sm:$0xff] %v980
    %997 = vst [vmem:[#allocation2 + $0x60] sm:$0xff] %v981
    %998 = vst [vmem:[#allocation2 + $0x68] sm:$0xff] %v982
    %999 = vst [vmem:[#allocation2 + $0x70] sm:$0xff] %v983
    %1000 = vst [vmem:[#allocation2 + $0x78] sm:$0xff] %v984
    // Predicated region
    $region30: #{tpu_custom_call.1} parent=1 // pred_check
      _
    $region31: #{tpu_custom_call.1} parent=1 // pred_check_branch
      %1002 = sbr.rel (0) target = $region33
    $region32: #{tpu_custom_call.1} parent=1 // pred_region
      %s1004 = ssub.s32 2048, 2048
      %1005 = vsyncadd [#allocation3], %s1004
      %s1006 = sshll.u32 [#allocation2], 4
      %s1007 = int_to_ptr.vmem [resolvable:$true] %s1006
      %1012 = dma.vmem_to_hbm [thread:$0]  %s1007, 2048, %s7, [#allocation3], 128, 128, 8
    $region33: #{tpu_custom_call.1} parent=1 // pred_fallthru
      _
    // Predicated region
    $region34: #{tpu_custom_call.1} parent=1 // pred_check
      _
    $region35: #{tpu_custom_call.1} parent=1 // pred_check_branch
      %1014 = sbr.rel (0) target = $region37
    $region36: #{tpu_custom_call.1} parent=1 // pred_region
      %1015 = dma.done [#allocation3], 2048
    $region37: #{tpu_custom_call.1} parent=1 // pred_fallthru
      _
    %1016 = vsyncpa [#allocation3], 1

</llo_original>
